<compile_context>
chip_gen: v7x
topology: tpu7x:2x2x1
jax: 0.10.0
libtpu: 0.0.40
codegen_flags: <defaults>
</compile_context>

<pallas_src>
import jax
import jax.numpy as jnp
from jax.experimental import pallas as pl
from jax.experimental.pallas import tpu as pltpu


def _round_up(a, b):
    return (a + b - 1) // b * b


def _init_embed_kernel(x_ref, w_ref, b_ref, o_ref):
    # x_ref: (TM, K)   w_ref: (K, GD)   b_ref: (1, GD)   o_ref: (TM, GD)
    x = x_ref[...]
    w = w_ref[...]
    b = b_ref[...]
    k_dim = w_ref.shape[0]                    # static: 2*G
    if k_dim >= 8:
        # Folded case: tiny contraction on the MXU; VPU stays free, kernel is
        # HBM-bound.
        acc = jnp.dot(x, w, preferred_element_type=jnp.float32)
    else:
        # Unfolded case (K == 2 or 4): a couple of broadcast FMAs on the VPU
        # are already below the HBM roofline; skip the MXU.
        acc = x[:, 0:1] * w[0:1, :]
        for k in range(1, k_dim):
            acc = acc + x[:, k:k + 1] * w[k:k + 1, :]
    o_ref[...] = (acc + b).astype(o_ref.dtype)


def tsp_init_embed(locs, weight, bias):
    """locs: (B, N, 2), weight: (D, 2) [PyTorch nn.Linear layout], bias: (D,).

    Returns (B, N, D) = locs @ weight.T + bias  (TSPInitEmbedder.forward).
    """
    B, N, node_dim = locs.shape
    D, k_in = weight.shape
    assert node_dim == 2 and k_in == 2

    out_dtype = locs.dtype
    M = B * N

    # Lane-folding factor: fold G consecutive rows into the 128-lane dim when
    # D < 128 so output stores are lane-dense (G*D == 128 for the realistic
    # embedding dims 16/32/64).
    if D < 128 and 128 % D == 0:
        G = min(128 // D, 16)
    else:
        G = 1
    K = 2 * G
    GD = G * D

    # Tiny folded parameters (block-diagonal weight, tiled bias), built once.
    w_t = weight.astype(jnp.float32).T                                    # (2, D)
    w_big = jnp.einsum("ij,cd->icjd", jnp.eye(G, dtype=jnp.float32), w_t)
    w_big = w_big.reshape(K, GD)                                          # (2G, G*D)
    b_big = jnp.tile(bias.astype(jnp.float32), G).reshape(1, GD)          # (1, G*D)

    # Row tiling in folded space, sized against an ~8 MiB double-buffered VMEM
    # budget (input tile is lane-padded to 128 in VMEM regardless of K).
    Mg = pl.cdiv(M, G)
    per_row_bytes = 2 * (128 * 4 + GD * 4)          # double-buffered in + out
    tmg_cap = max(8, min(4096, (8 * 1024 * 1024 // per_row_bytes) // 8 * 8))
    num_tiles = pl.cdiv(Mg, tmg_cap)
    TMg = _round_up(pl.cdiv(Mg, num_tiles), 8)      # sublane-aligned tile rows
    Mg_pad = TMg * num_tiles
    M_pad = Mg_pad * G

    x = locs.reshape(M, 2).astype(jnp.float32)
    if M_pad != M:
        x = jnp.pad(x, ((0, M_pad - M), (0, 0)))    # small tail pad only
    xg = x.reshape(Mg_pad, K)                       # free row-major lane fold

    out = pl.pallas_call(
        _init_embed_kernel,
        out_shape=jax.ShapeDtypeStruct((Mg_pad, GD), out_dtype),
        grid=(num_tiles,),
        in_specs=[
            pl.BlockSpec((TMg, K), lambda i: (i, 0)),   # streamed row tiles
            pl.BlockSpec((K, GD), lambda i: (0, 0)),    # resident weight
            pl.BlockSpec((1, GD), lambda i: (0, 0)),    # resident bias
        ],
        out_specs=pl.BlockSpec((TMg, GD), lambda i: (i, 0)),
        compiler_params=pltpu.CompilerParams(
            dimension_semantics=("parallel",),
        ),
    )(xg, w_big, b_big)

    out = out.reshape(M_pad, D)                     # undo the lane fold (free)
    if M_pad != M:
        out = out[:M]
    return out.reshape(B, N, D)


if __name__ == "__main__":
    key = jax.random.PRNGKey(0)
    k_locs, k_w, k_b = jax.random.split(key, 3)

    batch, num_nodes, embedding_dim = 2, 8, 32

    # Deterministic synthetic inputs/params (PyTorch nn.Linear: W:(D,2), b:(D,)).
    locs = jax.random.uniform(k_locs, (batch, num_nodes, 2), dtype=jnp.float32)
    weight = jax.random.normal(k_w, (embedding_dim, 2), dtype=jnp.float32) * 0.1
    bias = jax.random.normal(k_b, (embedding_dim,), dtype=jnp.float32) * 0.1

    out = tsp_init_embed(locs, weight, bias)
    jax.block_until_ready(out)

    # Reference check in plain JAX.
    ref = jnp.einsum("bnk,dk->bnd", locs, weight) + bias
    assert out.shape == (batch, num_nodes, embedding_dim)
    assert jnp.allclose(out, ref, atol=1e-5), "mismatch vs reference"

    print("KERNEL_OK")
</pallas_src>

<mosaic_0001>
module attributes {stable_mosaic.version = 11 : i64} {
  func.func @_init_embed_kernel(%arg0: i32, %arg1: memref<8x8xf32, #tpu.memory_space<vmem>>, %arg2: memref<8x128xf32, #tpu.memory_space<vmem>>, %arg3: memref<1x128xf32, #tpu.memory_space<vmem>>, %arg4: memref<8x128xf32, #tpu.memory_space<vmem>>) attributes {dimension_semantics = [#tpu.dimension_semantics<parallel>], iteration_bounds = array<i64: 1>, scalar_prefetch = 0 : i64, scratch_operands = 0 : i64, tpu.core_type = #tpu.core_type<tc>, window_params = [{transform_indices = @transform_0, window_bounds = array<i64: 8, 8>}, {pipeline_mode = #tpu.pipeline_mode<synchronous>, transform_indices = @transform_1, window_bounds = array<i64: 8, 128>}, {pipeline_mode = #tpu.pipeline_mode<synchronous>, transform_indices = @transform_2, window_bounds = array<i64: 1, 128>}, {transform_indices = @transform_3, window_bounds = array<i64: 8, 128>}]} {
    %c0 = arith.constant 0 : index
    %c0_0 = arith.constant 0 : index
    %0 = vector.load %arg1[%c0, %c0_0] : memref<8x8xf32, #tpu.memory_space<vmem>>, vector<8x8xf32>
    %c0_1 = arith.constant 0 : index
    %c0_2 = arith.constant 0 : index
    %1 = vector.load %arg2[%c0_1, %c0_2] : memref<8x128xf32, #tpu.memory_space<vmem>>, vector<8x128xf32>
    %c0_3 = arith.constant 0 : index
    %c0_4 = arith.constant 0 : index
    %2 = vector.load %arg3[%c0_3, %c0_4] : memref<1x128xf32, #tpu.memory_space<vmem>>, vector<1x128xf32>
    %cst = arith.constant dense<0.000000e+00> : vector<8x128xf32>
    %3 = tpu.matmul %0, %1, %cst {dimension_numbers = #tpu.dot_dimension_numbers<[1], [0], [0], [1], [0, 0, 1, 1], [], []>} : vector<8x8xf32>, vector<8x128xf32>, vector<8x128xf32> -> vector<8x128xf32>
    %4 = vector.broadcast %2 : vector<1x128xf32> to vector<8x128xf32>
    %5 = arith.addf %3, %4 : vector<8x128xf32>
    %c0_5 = arith.constant 0 : index
    %c0_6 = arith.constant 0 : index
    %6 = vector.load %arg4[%c0_5, %c0_6] : memref<8x128xf32, #tpu.memory_space<vmem>>, vector<8x128xf32>
    tpu.vector_store %arg4[%c0_5, %c0_6], %5 {strides = array<i32>} : memref<8x128xf32, #tpu.memory_space<vmem>>, vector<8x128xf32>,
    return
  }
  func.func @transform_0(%arg0: i32) -> (i32, i32) {
    %c0_i32 = arith.constant 0 : i32
    %c0_i32_0 = arith.constant 0 : i32
    return %arg0, %c0_i32 : i32, i32
  }
  func.func @transform_1(%arg0: i32) -> (i32, i32) {
    %c0_i32 = arith.constant 0 : i32
    %c0_i32_0 = arith.constant 0 : i32
    %c0_i32_1 = arith.constant 0 : i32
    return %c0_i32, %c0_i32_0 : i32, i32
  }
  func.func @transform_2(%arg0: i32) -> (i32, i32) {
    %c0_i32 = arith.constant 0 : i32
    %c0_i32_0 = arith.constant 0 : i32
    %c0_i32_1 = arith.constant 0 : i32
    return %c0_i32, %c0_i32_0 : i32, i32
  }
  func.func @transform_3(%arg0: i32) -> (i32, i32) {
    %c0_i32 = arith.constant 0 : i32
    %c0_i32_0 = arith.constant 0 : i32
    return %arg0, %c0_i32 : i32, i32
  }
}

</mosaic_0001>

<llo_original>
// kernel: tpu_custom_call.1
$region0: #{tpu_custom_call.1}
  #allocation0 [shape = 'u32[]', space=smem, size = 0x4, offset = 0x4, fixed_abs, tag = 'smem constant byte address 0x4 - core index']
  #allocation1 [shape = 'u32[144,128]{1,0:T(1,128)}', space=vmem, size = 0x12000, scoped, tag = 'internal scratch']
  %s0 = inlined_call_operand.hbm [shape: f32[8,8], index: 0, kind: input, shape index: {}]
  %s1 = inlined_call_operand.hbm [shape: f32[8,128], index: 1, kind: input, shape index: {}]
  %s2 = inlined_call_operand.vmem [shape: f32[1,128], index: 2, kind: input, shape index: {}]
  %s3 = inlined_call_operand.hbm [shape: f32[8,128], index: 3, kind: output, shape index: {}]
  %s4 = sld [smem:[#allocation0]]
  $region30: #{tpu_custom_call.1} parent=0
    _
  %s6 = ssub.s32 1, %s4
  %s7 = scalar_select 0, %s6, %s4
  $region1: #{tpu_custom_call.1} parent=0
    #allocation2 [shape = 'u8[4096]{0}', space=vmem, size = 0x1000, scoped, tag = 'input window, operand 0, single buffered']
    #allocation3 [shape = 's32[1]{0}', space=sflag, size = 0x4, scoped, tag = 'scoped memory for tpu_custom_call.1']
    #allocation4 [shape = 's32[1]{0}', space=sflag, size = 0x4, scoped, tag = 'scoped memory for tpu_custom_call.1']
    #allocation5 [shape = 'u8[4096]{0}', space=vmem, size = 0x1000, scoped, tag = 'input window, operand 1, single buffered']
    #allocation6 [shape = 's32[1]{0}', space=sflag, size = 0x4, scoped, tag = 'scoped memory for tpu_custom_call.1']
    #allocation7 [shape = 'u8[4096]{0}', space=vmem, size = 0x1000, scoped, tag = 'output window, operand 0, single buffered']
    %8 = vsyncpa [#allocation3], 0
    %9 = vsyncpa [#allocation6], 0
    %10 = vsyncpa [#allocation4], 0
    // Predicated region
    $region2: #{tpu_custom_call.1} parent=1 // pred_check
      _
    $region3: #{tpu_custom_call.1} parent=1 // pred_check_branch
      %12 = sbr.rel (0) target = $region5
    $region4: #{tpu_custom_call.1} parent=1 // pred_region
      %s14 = ssub.s32 128, 128
      %15 = vsyncadd [#allocation3], %s14
      %s17 = sshll.u32 [#allocation2], 4
      %s18 = int_to_ptr.vmem [resolvable:$true] %s17
      %20 = dma.hbm_to_vmem [thread:$0]  %s0, 128, %s18, [#allocation3]
    $region5: #{tpu_custom_call.1} parent=1 // pred_fallthru
      _
    // Predicated region
    $region6: #{tpu_custom_call.1} parent=1 // pred_check
      _
    $region7: #{tpu_custom_call.1} parent=1 // pred_check_branch
      %22 = sbr.rel (0) target = $region9
    $region8: #{tpu_custom_call.1} parent=1 // pred_region
      %s24 = ssub.s32 128, 128
      %25 = vsyncadd [#allocation6], %s24
      %s27 = sshll.u32 [#allocation5], 4
      %s28 = int_to_ptr.vmem [resolvable:$true] %s27
      %30 = dma.hbm_to_vmem [thread:$0]  %s1, 128, %s28, [#allocation6]
    $region9: #{tpu_custom_call.1} parent=1 // pred_fallthru
      _
    // Predicated region
    $region10: #{tpu_custom_call.1} parent=1 // pred_check
      _
    $region11: #{tpu_custom_call.1} parent=1 // pred_check_branch
      %32 = sbr.rel (0) target = $region13
    $region12: #{tpu_custom_call.1} parent=1 // pred_region
      _
    $region13: #{tpu_custom_call.1} parent=1 // pred_fallthru
      _
    // Predicated region
    $region14: #{tpu_custom_call.1} parent=1 // pred_check
      _
    $region15: #{tpu_custom_call.1} parent=1 // pred_check_branch
      %34 = sbr.rel (0) target = $region17
    $region16: #{tpu_custom_call.1} parent=1 // pred_region
      %35 = dma.done [#allocation3], 128
    $region17: #{tpu_custom_call.1} parent=1 // pred_fallthru
      _
    // Predicated region
    $region18: #{tpu_custom_call.1} parent=1 // pred_check
      _
    $region19: #{tpu_custom_call.1} parent=1 // pred_check_branch
      %37 = sbr.rel (0) target = $region21
    $region20: #{tpu_custom_call.1} parent=1 // pred_region
      %38 = dma.done [#allocation6], 128
    $region21: #{tpu_custom_call.1} parent=1 // pred_fallthru
      _
    %v39 = vld [vmem:[#allocation2] sm:$0xff]
    %v40 = vld [vmem:[#allocation5] sm:$0xff]
    %v41 = vld [vmem:[%s2] sm:$0x1]
    %v43 = vlaneseq
    %v44 = vshrl.u32 %v43, 7
    %v45 = vsub.s32 0, %v44
    %v46 = vrot.slane %v41, %v45
    %vm48 = vcmask 64512
    %v50 = vsel %vm48, %v39, 0
    %52 = vmatprep.subr.mxu0 0.0
    %53 = vmatpush1.msra.mxu0 %v40
    %54 = vmatprep.subr.mxu0 0.0
    %55 = vmatpush1.msra.mxu0 0.0
    %56 = vmatprep.subr.mxu0 0.0
    %57 = vmatpush1.msra.mxu0 0.0
    %58 = vmatprep.subr.mxu0 0.0
    %59 = vmatpush1.msra.mxu0 0.0
    %60 = vmatprep.subr.mxu0 0.0
    %61 = vmatpush1.msra.mxu0 0.0
    %62 = vmatprep.subr.mxu0 0.0
    %63 = vmatpush1.msra.mxu0 0.0
    %64 = vmatprep.subr.mxu0 0.0
    %65 = vmatpush1.msra.mxu0 0.0
    %66 = vmatprep.subr.mxu0 0.0
    %67 = vmatpush1.msra.mxu0 0.0
    %68 = vmatprep.subr.mxu0 0.0
    %69 = vmatpush1.msra.mxu0 0.0
    %70 = vmatprep.subr.mxu0 0.0
    %71 = vmatpush1.msra.mxu0 0.0
    %72 = vmatprep.subr.mxu0 0.0
    %73 = vmatpush1.msra.mxu0 0.0
    %74 = vmatprep.subr.mxu0 0.0
    %75 = vmatpush1.msra.mxu0 0.0
    %76 = vmatprep.subr.mxu0 0.0
    %77 = vmatpush1.msra.mxu0 0.0
    %78 = vmatprep.subr.mxu0 0.0
    %79 = vmatpush1.msra.mxu0 0.0
    %80 = vmatprep.subr.mxu0 0.0
    %81 = vmatpush1.msra.mxu0 0.0
    %82 = vmatprep.subr.mxu0 0.0
    %83 = vmatpush1.msra.mxu0 0.0
    %84 = vmatprep.subr.mxu0 0.0
    %85 = vmatpush1.msra.mxu0 0.0
    %86 = vmatprep.subr.mxu0 0.0
    %87 = vmatpush1.msra.mxu0 0.0
    %88 = vmatprep.subr.mxu0 0.0
    %89 = vmatpush1.msra.mxu0 0.0
    %90 = vmatprep.subr.mxu0 0.0
    %91 = vmatpush1.msra.mxu0 0.0
    %92 = vmatprep.subr.mxu0 0.0
    %93 = vmatpush1.msra.mxu0 0.0
    %94 = vmatprep.subr.mxu0 0.0
    %95 = vmatpush1.msra.mxu0 0.0
    %96 = vmatprep.subr.mxu0 0.0
    %97 = vmatpush1.msra.mxu0 0.0
    %98 = vmatprep.subr.mxu0 0.0
    %99 = vmatpush1.msra.mxu0 0.0
    %100 = vmatprep.subr.mxu0 0.0
    %101 = vmatpush1.msra.mxu0 0.0
    %102 = vmatprep.subr.mxu0 0.0
    %103 = vmatpush1.msra.mxu0 0.0
    %104 = vmatprep.subr.mxu0 0.0
    %105 = vmatpush1.msra.mxu0 0.0
    %106 = vmatprep.subr.mxu0 0.0
    %107 = vmatpush1.msra.mxu0 0.0
    %108 = vmatprep.subr.mxu0 0.0
    %109 = vmatpush1.msra.mxu0 0.0
    %110 = vmatprep.subr.mxu0 0.0
    %111 = vmatpush1.msra.mxu0 0.0
    %112 = vmatprep.subr.mxu0 0.0
    %113 = vmatpush1.msra.mxu0 0.0
    %114 = vmatprep.subr.mxu0 0.0
    %115 = vmatpush1.msra.mxu0 0.0
    %116 = vmatprep.mubr.f32.mxu0 0.0
    %117 = vmatmul.mubr.f32.gmra.mrb[0].mxu0 %v50
    %v118 = vpop.f32.mrb[0].mxu0
    %v119 = vadd.f32 %v46, %v118
    %v120 = vpop.f32.mrb[0].mxu0
    %121 = vdwg.mxu0
    %122 = vst [vmem:[#allocation7] sm:$0xff] %v119
    // Predicated region
    $region22: #{tpu_custom_call.1} parent=1 // pred_check
      _
    $region23: #{tpu_custom_call.1} parent=1 // pred_check_branch
      %124 = sbr.rel (0) target = $region25
    $region24: #{tpu_custom_call.1} parent=1 // pred_region
      %s126 = ssub.s32 128, 128
      %127 = vsyncadd [#allocation4], %s126
      %s129 = sshll.u32 [#allocation7], 4
      %s130 = int_to_ptr.vmem [resolvable:$true] %s129
      %132 = dma.vmem_to_hbm [thread:$0]  %s130, 128, %s3, [#allocation4]
    $region25: #{tpu_custom_call.1} parent=1 // pred_fallthru
      _
    // Predicated region
    $region26: #{tpu_custom_call.1} parent=1 // pred_check
      _
    $region27: #{tpu_custom_call.1} parent=1 // pred_check_branch
      %134 = sbr.rel (0) target = $region29
    $region28: #{tpu_custom_call.1} parent=1 // pred_region
      %135 = dma.done [#allocation4], 128
    $region29: #{tpu_custom_call.1} parent=1 // pred_fallthru
      _
    %136 = vsyncpa [#allocation3], 1
    %137 = vsyncpa [#allocation6], 1
    %138 = vsyncpa [#allocation4], 1

</llo_original>
